<compile_context>
chip_gen: v5e
topology: v5e:2x2
jax: 0.10.0
libtpu: 0.0.40
codegen_flags: <defaults>
</compile_context>

<pallas_src>
import functools

import jax
import jax.numpy as jnp
from jax.experimental import pallas as pl
from jax.experimental.pallas import tpu as pltpu


# ----------------------------------------------------------------------------- helpers
def _round_up(x, m):
    return (x + m - 1) // m * m


def _choose_row_tile(m_rows):
    """Rows per grid step: ~256 fills the MXU (v6e/v7x); keep >= 2 steps when
    possible so both v7x TensorCores get work via the 'parallel' grid axis."""
    m_pad8 = _round_up(m_rows, 8)
    tm = min(256, m_pad8)
    if m_pad8 > 8 and -(-m_pad8 // tm) < 2:      # only one step -> split in two
        tm = _round_up(-(-m_pad8 // 2), 8)
    return tm


# ----------------------------------------------------------------------------- kernels
def _fused_projection_kernel(x_ref, w_ref, o_ref):
    # x_ref: (TM, Fin) rows of flattened (B*N, Fin); w_ref: (Fin, H*d); o_ref: (TM, H*d)
    o_ref[...] = jnp.dot(
        x_ref[...], w_ref[...], preferred_element_type=jnp.float32
    ).astype(o_ref.dtype)


def _mhgat_attention_kernel(h_ref, w_ref, o_ref, *, num_heads, d_head, alpha):
    # h_ref: (N, Fin) one batch element; w_ref: (Fin, H*d); o_ref: (N, H*d)
    hp = jnp.dot(h_ref[...], w_ref[...], preferred_element_type=jnp.float32)  # (N, Dout)
    n_nodes, dout = hp.shape

    col = jax.lax.broadcasted_iota(jnp.int32, (1, dout), 1)
    scale = jnp.zeros((n_nodes, dout), jnp.float32)

    for i in range(num_heads):                               # small static unroll (H=4)
        hp_i = hp[:, i * d_head:(i + 1) * d_head]            # (N, d) static lane slice
        # e = hp_i @ hp_i^T (contract last dims; no explicit transpose).
        e = jax.lax.dot_general(
            hp_i, hp_i, (((1,), (1,)), ((), ())),
            preferred_element_type=jnp.float32)               # (N, N)
        e = jnp.where(e > 0, e, alpha * e)                    # LeakyReLU(alpha)
        m = jnp.max(e, axis=-1, keepdims=True)
        p = jnp.exp(e - m)
        # approx=False: this path exists only for rounding fidelity, keep full precision.
        inv = pl.reciprocal(jnp.sum(p, axis=-1, keepdims=True), approx=False)
        row_scale = jnp.sum(p * inv, axis=-1, keepdims=True)  # rowsum(softmax) ~= 1.0
        # Apply per-head scale to its lane band without a lane-offset concatenate.
        band = ((col >= i * d_head) & (col < (i + 1) * d_head)).astype(jnp.float32)
        scale = scale + row_scale * band                       # (N,1)*(1,Dout) broadcast

    o_ref[...] = (hp * scale).astype(o_ref.dtype)


# ----------------------------------------------------------------------------- wrapper
def multi_head_gat_forward(h, w_heads, *, alpha=0.2, exact_softmax=False):
    """h: (B, N, Fin).  w_heads: (num_heads, out_per_head, Fin) PyTorch Linear weights.

    Returns (B, N, num_heads * out_per_head), matching the torch module's output.
    Inputs keep their dtype (pass bf16 to halve HBM->VMEM DMA bytes); accumulation
    inside the kernels is f32.
    """
    B, N, Fin = h.shape
    num_heads, d_head, _ = w_heads.shape
    Dout = num_heads * d_head

    # Fuse all heads into one (Fin, H*d) projection matrix; head i occupies columns
    # [i*d : (i+1)*d], so the kernel output is already the torch concat.
    w_all = jnp.concatenate(
        [jnp.transpose(w_heads[i]) for i in range(num_heads)], axis=-1
    ).astype(h.dtype)
    itemsize = jnp.dtype(h.dtype).itemsize

    if exact_softmax:
        # Literal leakyrelu/softmax/row-scale path (softmax rows sum to 1, so this only
        # differs from the fast path by a few ULPs of rounding).
        kernel = functools.partial(
            _mhgat_attention_kernel,
            num_heads=num_heads, d_head=d_head, alpha=float(alpha))
        cost = pl.CostEstimate(
            flops=2 * B * N * Fin * Dout + 2 * B * N * N * Dout + 6 * B * num_heads * N * N,
            transcendentals=B * num_heads * N * N,
            bytes_accessed=itemsize * (B * N * Fin + Fin * Dout + B * N * Dout))
        return pl.pallas_call(
            kernel,
            out_shape=jax.ShapeDtypeStruct((B, N, Dout), h.dtype),
            grid=(B,),
            in_specs=[
                pl.BlockSpec((None, N, Fin), lambda b: (b, 0, 0)),   # batch dim squeezed
                pl.BlockSpec((Fin, Dout), lambda b: (0, 0)),
            ],
            out_specs=pl.BlockSpec((None, N, Dout), lambda b: (b, 0, 0)),
            compiler_params=pltpu.CompilerParams(dimension_semantics=("parallel",)),
            cost_estimate=cost,
        )(h, w_all)

    # ---- Fast path (default): output == h_prime, i.e. one fused projection matmul ----
    M = B * N
    x2 = h.reshape(M, Fin)                       # free reshape (contiguous)
    tm = _choose_row_tile(M)
    m_pad = _round_up(M, tm)
    if m_pad != M:
        x2 = jnp.pad(x2, ((0, m_pad - M), (0, 0)))

    cost = pl.CostEstimate(
        flops=2 * M * Fin * Dout,
        transcendentals=0,
        bytes_accessed=itemsize * (M * Fin + Fin * Dout + M * Dout))

    y2 = pl.pallas_call(
        _fused_projection_kernel,
        out_shape=jax.ShapeDtypeStruct((m_pad, Dout), h.dtype),
        grid=(m_pad // tm,),
        in_specs=[
            pl.BlockSpec((tm, Fin), lambda i: (i, 0)),
            pl.BlockSpec((Fin, Dout), lambda i: (0, 0)),
        ],
        out_specs=pl.BlockSpec((tm, Dout), lambda i: (i, 0)),
        compiler_params=pltpu.CompilerParams(dimension_semantics=("parallel",)),
        cost_estimate=cost,
    )(x2, w_all)
    return y2[:M].reshape(B, N, Dout)


# ----------------------------------------------------------------------------- test
if __name__ == "__main__":
    # Small shapes consistent with the module: batch=2, nodes=8, in_features=16,
    # out_features=32, num_heads=4 (out_per_head=8).
    B, N, Fin = 2, 8, 16
    num_heads, d_head = 4, 8
    alpha = 0.2

    key = jax.random.PRNGKey(0)
    kh, kw = jax.random.split(key, 2)
    h = jax.random.normal(kh, (B, N, Fin), jnp.float32)
    # Per-head nn.Linear(in_features, out_per_head, bias=False) weights: (H, d, Fin).
    w_heads = 0.2 * jax.random.normal(kw, (num_heads, d_head, Fin), jnp.float32)

    out_fast = jax.block_until_ready(multi_head_gat_forward(h, w_heads, alpha=alpha))
    out_exact = jax.block_until_ready(
        multi_head_gat_forward(h, w_heads, alpha=alpha, exact_softmax=True))

    # Pure-JAX reference mirroring the torch forward literally
    # (broadcast multiply, then sum over dim=2).
    ref_heads = []
    for i in range(num_heads):
        hp = jnp.einsum('bnf,df->bnd', h, w_heads[i])                 # Linear, no bias
        e = jnp.einsum('bnd,bmd->bnm', hp, hp)                        # h' @ h'^T
        e = jnp.where(e > 0, e, alpha * e)                            # LeakyReLU
        att = jax.nn.softmax(e, axis=2)                               # softmax(dim=2)
        out_i = jnp.sum(hp[:, :, None, :] * att[..., None], axis=2)   # broadcast + sum
        ref_heads.append(out_i)
    ref = jnp.concatenate(ref_heads, axis=-1)

    assert out_fast.shape == ref.shape == (B, N, num_heads * d_head)
    assert out_exact.shape == ref.shape
    assert jnp.allclose(out_fast, ref, atol=1e-4, rtol=1e-4)
    assert jnp.allclose(out_exact, ref, atol=1e-4, rtol=1e-4)

    # bf16 inputs (halved DMA bytes) also run through the same kernel; f32 accumulation.
    out_bf16 = jax.block_until_ready(
        multi_head_gat_forward(h.astype(jnp.bfloat16),
                               w_heads.astype(jnp.bfloat16), alpha=alpha))
    assert out_bf16.dtype == jnp.bfloat16
    assert jnp.allclose(out_bf16.astype(jnp.float32), ref, atol=5e-2, rtol=5e-2)

    print("KERNEL_OK")
</pallas_src>

<mosaic_0001>
module attributes {stable_mosaic.version = 11 : i64} {
  func.func @_fused_projection_kernel(%arg0: i32, %arg1: memref<8x16xf32, #tpu.memory_space<vmem>>, %arg2: memref<16x32xf32, #tpu.memory_space<vmem>>, %arg3: memref<8x32xf32, #tpu.memory_space<vmem>>) attributes {dimension_semantics = [#tpu.dimension_semantics<parallel>], iteration_bounds = array<i64: 2>, scalar_prefetch = 0 : i64, scratch_operands = 0 : i64, tpu.core_type = #tpu.core_type<tc>, window_params = [{transform_indices = @transform_0, window_bounds = array<i64: 8, 16>}, {pipeline_mode = #tpu.pipeline_mode<synchronous>, transform_indices = @transform_1, window_bounds = array<i64: 16, 32>}, {transform_indices = @transform_2, window_bounds = array<i64: 8, 32>}]} {
    %c0 = arith.constant 0 : index
    %c0_0 = arith.constant 0 : index
    %0 = vector.load %arg1[%c0, %c0_0] : memref<8x16xf32, #tpu.memory_space<vmem>>, vector<8x16xf32>
    %c0_1 = arith.constant 0 : index
    %c0_2 = arith.constant 0 : index
    %1 = vector.load %arg2[%c0_1, %c0_2] : memref<16x32xf32, #tpu.memory_space<vmem>>, vector<16x32xf32>
    %cst = arith.constant dense<0.000000e+00> : vector<8x32xf32>
    %2 = tpu.matmul %0, %1, %cst {dimension_numbers = #tpu.dot_dimension_numbers<[1], [0], [0], [1], [0, 0, 1, 1], [], []>} : vector<8x16xf32>, vector<16x32xf32>, vector<8x32xf32> -> vector<8x32xf32>
    %c0_3 = arith.constant 0 : index
    %c0_4 = arith.constant 0 : index
    %3 = vector.load %arg3[%c0_3, %c0_4] : memref<8x32xf32, #tpu.memory_space<vmem>>, vector<8x32xf32>
    tpu.vector_store %arg3[%c0_3, %c0_4], %2 {strides = array<i32>} : memref<8x32xf32, #tpu.memory_space<vmem>>, vector<8x32xf32>,
    return
  }
  func.func @transform_0(%arg0: i32) -> (i32, i32) {
    %c0_i32 = arith.constant 0 : i32
    %c0_i32_0 = arith.constant 0 : i32
    return %arg0, %c0_i32 : i32, i32
  }
  func.func @transform_1(%arg0: i32) -> (i32, i32) {
    %c0_i32 = arith.constant 0 : i32
    %c0_i32_0 = arith.constant 0 : i32
    %c0_i32_1 = arith.constant 0 : i32
    return %c0_i32, %c0_i32_0 : i32, i32
  }
  func.func @transform_2(%arg0: i32) -> (i32, i32) {
    %c0_i32 = arith.constant 0 : i32
    %c0_i32_0 = arith.constant 0 : i32
    return %arg0, %c0_i32 : i32, i32
  }
}

</mosaic_0001>

<llo_original>
// kernel: tpu_custom_call.1
$region0: #{tpu_custom_call.1}
  #allocation0 [shape = 'u32[]', space=smem, size = 0x4, offset = 0x4, fixed_abs, tag = 'smem constant byte address 0x4 - core index']
  #allocation1 [shape = 'u32[72,128]{1,0:T(1,128)}', space=vmem, size = 0x9000, scoped, tag = 'internal scratch']
  %s0 = inlined_call_operand.hbm [shape: f32[16,16], index: 0, kind: input, shape index: {}]
  %s1 = inlined_call_operand.hbm [shape: f32[16,32], index: 1, kind: input, shape index: {}]
  %s2 = inlined_call_operand.hbm [shape: f32[16,32], index: 2, kind: output, shape index: {}]
  %s3 = sld [smem:[#allocation0]]
  $region49: #{tpu_custom_call.1} parent=0
    _
  %s5 = ssub.s32 1, %s3
  %s6 = scalar_select 0, %s5, %s3
  $region1: #{tpu_custom_call.1} parent=0
    #allocation2 [shape = 'u8[8192]{0}', space=vmem, size = 0x2000, scoped, tag = 'input window, operand 0']
    #allocation3 [shape = 's32[2]{0}', space=sflag, size = 0x8, scoped, tag = 'scoped memory for tpu_custom_call.1']
    #allocation4 [shape = 's32[2]{0}', space=sflag, size = 0x8, scoped, tag = 'scoped memory for tpu_custom_call.1']
    #allocation5 [shape = 'u8[8192]{0}', space=vmem, size = 0x2000, scoped, tag = 'input window, operand 1, single buffered']
    #allocation6 [shape = 's32[1]{0}', space=sflag, size = 0x4, scoped, tag = 'scoped memory for tpu_custom_call.1']
    #allocation7 [shape = 'u8[8192]{0}', space=vmem, size = 0x2000, scoped, tag = 'output window, operand 0']
    %7 = vsyncpa [#allocation3], 0
    %s8 = scalar_lea.sflag [#allocation3], 1
    %9 = vsyncpa %s8, 0
    %10 = vsyncpa [#allocation6], 0
    %11 = vsyncpa [#allocation4], 0
    %s12 = scalar_lea.sflag [#allocation4], 1
    %13 = vsyncpa %s12, 0
    loop: start=0, step=1, limit=4
    $region2: #{tpu_custom_call.1} parent=1 // loop_pre_header
      _
    $region3: #{tpu_custom_call.1} parent=1 // loop_header
      %s15 = sphi 0, %s19
      %p16 = scmp.ge.s32.totalorder %s15, 4
      %s25 = sphi 0, %s27
      %s28 = sphi 0, %s25
      %s29 = sphi 0, %s28
      %s45 = sphi 0, %s29
      %s49 = sphi 0, %s49
      %s51 = sphi 0, %s49
      %s52 = sphi 0, %s51
      %s66 = sphi 0, %s52
      %s72 = sphi 0, %s74
      %s75 = sphi 0, %s72
      %s76 = sphi 0, %s75
      %s92 = sphi 0, %s76
    $region4: #{tpu_custom_call.1} parent=1 // loop_header_branch
      %18 = sbr.rel (%p16) target = $region8
    $region5: #{tpu_custom_call.1} parent=1 // loop_body
      %s20 = ssub.s32 %s15, 1
      %s21 = ssub.s32 %s15, 2
      %s22 = sadd.s32 %s15, 1
      %s23 = ssub.s32 %s15, %s22
      %p24 = scmp.eq.s32.totalorder %s23, 0
      %s26 = sadd.s32 %s25, 1
      %s27 = scalar_select %p24, %s25, %s26
      %p30 = pneg %p24
      %p31 = scmp.eq.s32.totalorder %s15, 1
      %p32 = por %p30, %p31
      %p33 = scmp.ne.s32.totalorder %s25, %s28
      %p34 = scmp.eq.s32.totalorder %s15, 0
      %p35 = por %p33, %p34
      %p36 = scmp.ne.s32.totalorder %s25, %s28
      %p37 = scmp.eq.s32.totalorder %s20, 1
      %p38 = por %p36, %p37
      %p39 = scmp.ne.s32.totalorder %s28, %s29
      %p40 = scmp.eq.s32.totalorder %s20, 0
      %p41 = por %p39, %p40
      %p42 = scmp.ne.s32.totalorder %s28, %s29
      %p43 = scmp.eq.s32.totalorder %s21, 1
      %p44 = por %p42, %p43
      %p46 = scmp.ne.s32.totalorder %s29, %s45
      %p47 = scmp.eq.s32.totalorder %s21, 0
      %p48 = por %p46, %p47
      %s50 = sadd.s32 %s49, 1
      %p53 = scmp.eq.s32.totalorder %s15, 1
      %p54 = scmp.ne.s32.totalorder %s49, %s51
      %p55 = scmp.eq.s32.totalorder %s15, 0
      %p56 = por %p54, %p55
      %p57 = scmp.ne.s32.totalorder %s49, %s51
      %p58 = scmp.eq.s32.totalorder %s20, 1
      %p59 = por %p57, %p58
      %p60 = scmp.ne.s32.totalorder %s51, %s52
      %p61 = scmp.eq.s32.totalorder %s20, 0
      %p62 = por %p60, %p61
      %p63 = scmp.ne.s32.totalorder %s51, %s52
      %p64 = scmp.eq.s32.totalorder %s21, 1
      %p65 = por %p63, %p64
      %p67 = scmp.ne.s32.totalorder %s52, %s66
      %p68 = scmp.eq.s32.totalorder %s21, 0
      %p69 = por %p67, %p68
      %s70 = ssub.s32 %s15, %s22
      %p71 = scmp.eq.s32.totalorder %s70, 0
      %s73 = sadd.s32 %s72, 1
      %s74 = scalar_select %p71, %s72, %s73
      %p77 = pneg %p71
      %p78 = scmp.eq.s32.totalorder %s15, 1
      %p79 = por %p77, %p78
      %p80 = scmp.ne.s32.totalorder %s72, %s75
      %p81 = scmp.eq.s32.totalorder %s15, 0
      %p82 = por %p80, %p81
      %p83 = scmp.ne.s32.totalorder %s72, %s75
      %p84 = scmp.eq.s32.totalorder %s20, 1
      %p85 = por %p83, %p84
      %p86 = scmp.ne.s32.totalorder %s75, %s76
      %p87 = scmp.eq.s32.totalorder %s20, 0
      %p88 = por %p86, %p87
      %p89 = scmp.ne.s32.totalorder %s75, %s76
      %p90 = scmp.eq.s32.totalorder %s21, 1
      %p91 = por %p89, %p90
      %p93 = scmp.ne.s32.totalorder %s76, %s92
      %p94 = scmp.eq.s32.totalorder %s21, 0
      %p95 = por %p93, %p94
      %p96 = scmp.le.s32.totalorder 1, %s15
      %p97 = scmp.lt.s32.totalorder %s15, 3
      %p98 = pnand %p96, %p97
      %p99 = pneg %p98
      // Predicated region
      $region9: #{tpu_custom_call.1} parent=5 // pred_check
        _
      $region10: #{tpu_custom_call.1} parent=5 // pred_check_branch
        %101 = sbr.rel (%p98) target = $region12
      $region11: #{tpu_custom_call.1} parent=5 // pred_region
        %s102 = ssub.s32 %s15, 1
        // Predicated region
        $region13: #{tpu_custom_call.1} parent=11 // pred_check
          %p103 = pneg %p62
        $region14: #{tpu_custom_call.1} parent=11 // pred_check_branch
          %105 = sbr.rel (%p103) target = $region16
        $region15: #{tpu_custom_call.1} parent=11 // pred_region
          %107 = vsyncadd [#allocation6], 0
          %s108 = sshll.u32 %s1, 4
          %s109 = int_to_ptr.hbm [resolvable:$true] %s108
          %s110 = sshll.u32 [#allocation5], 4
          %s111 = int_to_ptr.vmem [resolvable:$true] %s110
          %116 = dma.hbm_to_vmem [thread:$0]  %s109, 256, %s111, [#allocation6], 128, 128, 8
        $region16: #{tpu_custom_call.1} parent=11 // pred_fallthru
          _
      $region12: #{tpu_custom_call.1} parent=5 // pred_fallthru
        _
      %p117 = scmp.lt.s32.totalorder %s15, 2
      // Predicated region
      $region17: #{tpu_custom_call.1} parent=5 // pred_check
        %p118 = pneg %p117
      $region18: #{tpu_custom_call.1} parent=5 // pred_check_branch
        %120 = sbr.rel (%p118) target = $region20
      $region19: #{tpu_custom_call.1} parent=5 // pred_region
        // Predicated region
        $region21: #{tpu_custom_call.1} parent=19 // pred_check
          %p121 = pneg %p35
        $region22: #{tpu_custom_call.1} parent=19 // pred_check_branch
          %123 = sbr.rel (%p121) target = $region24
        $region23: #{tpu_custom_call.1} parent=19 // pred_region
          %s124 = sand.u32 %s25, 1
          %s125 = scalar_lea.sflag [#allocation3], %s124
          %s126 = sand.u32 %s25, 1
          %s127 = smul.addr %s126, 8
          %s128 = scalar_lea.vmem [#allocation2], %s127
          %130 = vsyncadd %s125, 0
          %s131 = smul.addr %s15, 8
          %s132 = scalar_lea.hbm %s0, %s131
          %s134 = sshll.u32 %s132, 4
          %s135 = int_to_ptr.hbm [resolvable:$true] %s134
          %s136 = sshll.u32 %s128, 4
          %s137 = int_to_ptr.vmem [resolvable:$true] %s136
          %139 = dma.hbm_to_vmem [thread:$0]  %s135, 128, %s137, %s125
        $region24: #{tpu_custom_call.1} parent=19 // pred_fallthru
          _
      $region20: #{tpu_custom_call.1} parent=5 // pred_fallthru
        _
      %p140 = scmp.le.s32.totalorder 1, %s15
      %p141 = scmp.lt.s32.totalorder %s15, 3
      %p142 = pnand %p140, %p141
      %p143 = pneg %p142
      // Predicated region
      $region25: #{tpu_custom_call.1} parent=5 // pred_check
        _
      $region26: #{tpu_custom_call.1} parent=5 // pred_check_branch
        %145 = sbr.rel (%p142) target = $region28
      $region27: #{tpu_custom_call.1} parent=5 // pred_region
        %s146 = ssub.s32 %s15, 1
        %s147 = sand.u32 %s28, 1
        %s148 = scalar_lea.sflag [#allocation3], %s147
        %s149 = sand.u32 %s28, 1
        %s150 = smul.addr %s149, 8
        %s151 = scalar_lea.vmem [#allocation2], %s150
        // Predicated region
        $region29: #{tpu_custom_call.1} parent=27 // pred_check
          %p152 = pneg %p41
        $region30: #{tpu_custom_call.1} parent=27 // pred_check_branch
          %154 = sbr.rel (%p152) target = $region32
        $region31: #{tpu_custom_call.1} parent=27 // pred_region
          %156 = dma.done %s148, 128
        $region32: #{tpu_custom_call.1} parent=27 // pred_fallthru
          _
        // Predicated region
        $region33: #{tpu_custom_call.1} parent=27 // pred_check
          %p157 = pneg %p62
        $region34: #{tpu_custom_call.1} parent=27 // pred_check_branch
          %159 = sbr.rel (%p157) target = $region36
        $region35: #{tpu_custom_call.1} parent=27 // pred_region
          %161 = dma.done [#allocation6], 256
        $region36: #{tpu_custom_call.1} parent=27 // pred_fallthru
          _
        %s162 = sand.u32 %s28, 1
        %s163 = scalar_lea.sflag [#allocation3], %s162
        %s164 = sand.u32 %s28, 1
        %s165 = smul.addr %s164, 8
        %s166 = scalar_lea.vmem [#allocation2], %s165
        %p167 = pneg %p41
        %p168 = pneg %p38
        %p169 = pneg %p62
        %p170 = pneg %p59
        %p171 = pneg %p88
        %p172 = pneg %p85
        %s173 = sand.u32 %s75, 1
        %s174 = scalar_lea.sflag [#allocation4], %s173
        %s175 = sand.u32 %s75, 1
        %s176 = smul.addr %s175, 8
        %s177 = scalar_lea.vmem [#allocation7], %s176
        %v178 = vld [vmem:[%s151] sm:$0xff]
        %v179 = vld [vmem:[#allocation5] sm:$0xff]
        %v180 = vld [vmem:[#allocation5 + $0x8] sm:$0xff]
        %vm181 = vcmask 130048
        %v183 = vsel %vm181, %v178, 0
        %185 = vmatpush.msra.mxu0 0.0
        %186 = vmatpush.msra.mxu0 0.0
        %187 = vmatpush.msra.mxu0 0.0
        %188 = vmatpush.msra.mxu0 0.0
        %189 = vmatpush.msra.mxu0 0.0
        %190 = vmatpush.msra.mxu0 0.0
        %191 = vmatpush.msra.mxu0 0.0
        %192 = vmatpush.msra.mxu0 0.0
        %193 = vmatpush.msra.mxu0 0.0
        %194 = vmatpush.msra.mxu0 0.0
        %195 = vmatpush.msra.mxu0 0.0
        %196 = vmatpush.msra.mxu0 0.0
        %197 = vmatpush.msra.mxu0 0.0
        %198 = vmatpush.msra.mxu0 0.0
        %199 = vmatpush.msra.mxu0 %v180
        %200 = vmatpush.msra.mxu0 %v179
        %201 = vmatmul.f32.gmra.mxu0 %v183
        %v202 = vpop.f32.mrf.mxu0
        %v203 = vadd.f32 0.0, %v202
        %204 = vdwg.mxu0
        %vm205 = vcmask 261120
        %206 = vst.msk [vmem:[%s177] sm:$0xff] %vm205, %v203
        %s207 = sand.u32 %s75, 1
        %s208 = scalar_lea.sflag [#allocation4], %s207
        %s209 = sand.u32 %s75, 1
        %s210 = smul.addr %s209, 8
        %s211 = scalar_lea.vmem [#allocation7], %s210
        // Predicated region
        $region37: #{tpu_custom_call.1} parent=27 // pred_check
          %p212 = pneg %p85
        $region38: #{tpu_custom_call.1} parent=27 // pred_check_branch
          %214 = sbr.rel (%p212) target = $region40
        $region39: #{tpu_custom_call.1} parent=27 // pred_region
          %216 = vsyncadd %s208, 0
          %s217 = smul.addr %s20, 8
          %s218 = scalar_lea.hbm %s2, %s217
          %s220 = sshll.u32 %s211, 4
          %s221 = int_to_ptr.vmem [resolvable:$true] %s220
          %s222 = sshll.u32 %s218, 4
          %s223 = int_to_ptr.hbm [resolvable:$true] %s222
          %225 = dma.vmem_to_hbm [thread:$0]  %s221, 128, %s223, %s208
        $region40: #{tpu_custom_call.1} parent=27 // pred_fallthru
          _
      $region28: #{tpu_custom_call.1} parent=5 // pred_fallthru
        _
      %p226 = scmp.le.s32.totalorder 2, %s15
      // Predicated region
      $region41: #{tpu_custom_call.1} parent=5 // pred_check
        %p227 = pneg %p226
      $region42: #{tpu_custom_call.1} parent=5 // pred_check_branch
        %229 = sbr.rel (%p227) target = $region44
      $region43: #{tpu_custom_call.1} parent=5 // pred_region
        %s230 = ssub.s32 %s15, 2
        // Predicated region
        $region45: #{tpu_custom_call.1} parent=43 // pred_check
          %p231 = pneg %p91
        $region46: #{tpu_custom_call.1} parent=43 // pred_check_branch
          %233 = sbr.rel (%p231) target = $region48
        $region47: #{tpu_custom_call.1} parent=43 // pred_region
          %s234 = sand.u32 %s76, 1
          %s235 = scalar_lea.sflag [#allocation4], %s234
          %s236 = sand.u32 %s76, 1
          %s237 = smul.addr %s236, 8
          %s238 = scalar_lea.vmem [#allocation7], %s237
          %240 = dma.done %s235, 128
        $region48: #{tpu_custom_call.1} parent=43 // pred_fallthru
          _
      $region44: #{tpu_custom_call.1} parent=5 // pred_fallthru
        _
    $region6: #{tpu_custom_call.1} parent=1 // loop_footer
      %s19 = sadd.s32 1, %s15
    $region7: #{tpu_custom_call.1} parent=1 // loop_footer_branch
      %14 = sbr.rel target = $region3
    $region8: #{tpu_custom_call.1} parent=1 // loop_exit
      _
    %241 = vsyncpa [#allocation3], 1
    %s242 = scalar_lea.sflag [#allocation3], 1
    %243 = vsyncpa %s242, 1
    %244 = vsyncpa [#allocation6], 1
    %245 = vsyncpa [#allocation4], 1
    %s246 = scalar_lea.sflag [#allocation4], 1
    %247 = vsyncpa %s246, 1

</llo_original>
